<compile_context>
chip_gen: v6e
topology: v6e:2x2x1
jax: 0.10.0
libtpu: 0.0.40
codegen_flags: <defaults>
</compile_context>

<pallas_src>
import functools

import jax
import jax.numpy as jnp
from jax.experimental import pallas as pl
from jax.experimental.pallas import tpu as pltpu


def _round_up(x, m):
    return (x + m - 1) // m * m


# ---------------------------------------------------------------------------
# Kernel 1: KG aggregation.
#   Indices (head / tail / edge_type) are scalar-prefetched into SMEM.
#   Grid iterates over edge blocks ("arbitrary": all blocks accumulate into the
#   same VMEM-resident output block).  For each edge we do real row gathers
#   from the VMEM-resident entity/relation tables and a row scatter-add into
#   the output accumulator; counts are accumulated in a VMEM scratch.
#   Elementwise math stays f32 (v5e-friendly, no MXU needed here).
#
# TODO(synk): at production scale entity_emb / entity_agg do not fit VMEM;
#             keep entity_emb in HBM (memory_space=pl.ANY) with per-edge-block
#             DMA gathers, pre-sort edges by head and tile entity_agg rows.
# ---------------------------------------------------------------------------
def kg_agg_kernel(n_edges, edges_per_block,
                  head_ref, tail_ref, etype_ref,   # SMEM int32 (scalar prefetch)
                  emb_ref, w_ref,                  # VMEM f32: (N_pad,D_pad), (R_pad,D_pad)
                  out_ref,                         # VMEM f32: (N_pad,D_pad) resident accumulator
                  cnt_ref):                        # VMEM f32 scratch: (N_pad,128), lane 0 used
    eb = pl.program_id(0)
    n_ent = emb_ref.shape[0]
    n_rel = w_ref.shape[0]

    @pl.when(eb == 0)
    def _init():
        out_ref[...] = jnp.zeros_like(out_ref)
        cnt_ref[...] = jnp.zeros_like(cnt_ref)

    @pl.loop(0, edges_per_block)
    def _edge(e):
        ge = eb * edges_per_block + e

        @pl.when(ge < n_edges)               # mask padded edges
        def _valid():
            # Clamp indices: TPU has no runtime bounds check on VMEM reads, so
            # bad input degrades gracefully instead of reading undefined memory.
            t = jnp.clip(tail_ref[ge], 0, n_ent - 1)
            h = jnp.clip(head_ref[ge], 0, n_ent - 1)
            r = jnp.clip(etype_ref[ge] - 1, 0, n_rel - 1)   # module uses edge_type - 1

            neigh = emb_ref[pl.ds(t, 1), :] * w_ref[pl.ds(r, 1), :]        # (1, D_pad)
            out_ref[pl.ds(h, 1), :] = out_ref[pl.ds(h, 1), :] + neigh       # scatter-add
            cnt_ref[pl.ds(h, 1), :] = cnt_ref[pl.ds(h, 1), :] + 1.0         # degree count

    @pl.when(eb == pl.num_programs(0) - 1)
    def _finalize():
        counts = jnp.maximum(cnt_ref[:, 0:1], 1.0)          # empty rows -> divide by 1 -> 0
        out_ref[...] = out_ref[...] * pl.reciprocal(counts, approx=True)   # EUP divide


# ---------------------------------------------------------------------------
# Kernel 2: user aggregation — tiled bf16 MXU matmul with f32 accumulator.
#   grid = (U_pad//TM, K_pad//TK), K last ("arbitrary"), M "parallel".
#
# TODO(synk): interact_mat is a torch sparse COO matrix in the original; it is
#             densified (in bf16) here.  A scalar-prefetched COO segment-sum
#             kernel would cut HBM traffic by the sparsity factor.
# ---------------------------------------------------------------------------
def user_agg_kernel(mat_ref, emb_ref, out_ref, acc_ref):
    k = pl.program_id(1)

    @pl.when(k == 0)
    def _init():
        acc_ref[...] = jnp.zeros_like(acc_ref)

    acc_ref[...] += jnp.dot(mat_ref[...], emb_ref[...],
                            preferred_element_type=jnp.float32)

    @pl.when(k == pl.num_programs(1) - 1)
    def _finalize():
        out_ref[...] = acc_ref[...].astype(out_ref.dtype)


# ---------------------------------------------------------------------------
# Wrapper
# ---------------------------------------------------------------------------
@jax.jit
def hgcn_layer_forward(entity_emb, edge_index, edge_type, interact_mat, weight):
    n_entities, dim = entity_emb.shape
    n_edges = edge_index.shape[1]
    n_relations = weight.shape[0]
    n_users = interact_mat.shape[0]

    # ---- padded / lane-dense shapes --------------------------------------
    d_pad = _round_up(dim, 128)                 # lane-dense outputs & emb rows
    n_pad = _round_up(n_entities, 8)
    r_pad = _round_up(n_relations, 8)
    edges_per_block = min(512, _round_up(n_edges, 8))
    e_pad = _round_up(n_edges, edges_per_block)

    # VMEM budget: toy shapes fit easily; cap below v7x's 64 MiB physical
    # (well under v5e/v6e's 128 MiB).
    vmem_cap = 48 * 1024 * 1024

    # ---- KG aggregation ----------------------------------------------------
    emb_f32 = jnp.zeros((n_pad, d_pad), jnp.float32).at[:n_entities, :dim].set(
        entity_emb.astype(jnp.float32))
    w_f32 = jnp.zeros((r_pad, d_pad), jnp.float32).at[:n_relations, :dim].set(
        weight.astype(jnp.float32))

    head = jnp.zeros((e_pad,), jnp.int32).at[:n_edges].set(edge_index[0].astype(jnp.int32))
    tail = jnp.zeros((e_pad,), jnp.int32).at[:n_edges].set(edge_index[1].astype(jnp.int32))
    etype = jnp.ones((e_pad,), jnp.int32).at[:n_edges].set(edge_type.astype(jnp.int32))

    entity_agg_p = pl.pallas_call(
        functools.partial(kg_agg_kernel, n_edges, edges_per_block),
        out_shape=jax.ShapeDtypeStruct((n_pad, d_pad), jnp.float32),
        grid_spec=pltpu.PrefetchScalarGridSpec(
            num_scalar_prefetch=3,                      # head, tail, etype -> SMEM
            grid=(e_pad // edges_per_block,),
            in_specs=[
                pl.BlockSpec((n_pad, d_pad), lambda eb, hd, tl, et: (0, 0)),
                pl.BlockSpec((r_pad, d_pad), lambda eb, hd, tl, et: (0, 0)),
            ],
            out_specs=pl.BlockSpec((n_pad, d_pad), lambda eb, hd, tl, et: (0, 0)),
            scratch_shapes=[pltpu.VMEM((n_pad, 128), jnp.float32)],
        ),
        compiler_params=pltpu.CompilerParams(
            dimension_semantics=("arbitrary",),          # sequential accumulation over edges
            vmem_limit_bytes=vmem_cap,
        ),
    )(head, tail, etype, emb_f32, w_f32)
    entity_agg = entity_agg_p[:n_entities, :dim]

    # ---- user aggregation (tiled bf16 matmul) ------------------------------
    tm = min(256, _round_up(n_users, 8))
    tk = min(512, _round_up(n_entities, 128))
    u_pad = _round_up(n_users, tm)
    k_pad = _round_up(n_entities, tk)

    mat_bf16 = jnp.zeros((u_pad, k_pad), jnp.bfloat16).at[:n_users, :n_entities].set(
        interact_mat.astype(jnp.bfloat16))
    emb_bf16 = jnp.zeros((k_pad, d_pad), jnp.bfloat16).at[:n_entities, :dim].set(
        entity_emb.astype(jnp.bfloat16))

    user_agg_p = pl.pallas_call(
        user_agg_kernel,
        out_shape=jax.ShapeDtypeStruct((u_pad, d_pad), jnp.float32),
        grid_spec=pltpu.PrefetchScalarGridSpec(
            num_scalar_prefetch=0,
            grid=(u_pad // tm, k_pad // tk),
            in_specs=[
                pl.BlockSpec((tm, tk), lambda i, k: (i, k)),
                pl.BlockSpec((tk, d_pad), lambda i, k: (k, 0)),
            ],
            out_specs=pl.BlockSpec((tm, d_pad), lambda i, k: (i, 0)),
            scratch_shapes=[pltpu.VMEM((tm, d_pad), jnp.float32)],
        ),
        compiler_params=pltpu.CompilerParams(
            dimension_semantics=("parallel", "arbitrary"),
            vmem_limit_bytes=vmem_cap,
        ),
    )(mat_bf16, emb_bf16)
    user_agg = user_agg_p[:n_users, :dim]

    return entity_agg, user_agg


# ---------------------------------------------------------------------------
# Pure-JAX reference for correctness checking.
# ---------------------------------------------------------------------------
def hgcn_layer_reference(entity_emb, edge_index, edge_type, interact_mat, weight):
    n_entities = entity_emb.shape[0]
    head, tail = edge_index[0], edge_index[1]
    edge_relation_emb = weight[edge_type - 1]
    neigh = entity_emb[tail] * edge_relation_emb
    sums = jax.ops.segment_sum(neigh, head, num_segments=n_entities)
    counts = jax.ops.segment_sum(jnp.ones((head.shape[0],), jnp.float32),
                                 head, num_segments=n_entities)
    entity_agg = sums / jnp.maximum(counts, 1.0)[:, None]
    user_agg = interact_mat @ entity_emb
    return entity_agg, user_agg


if __name__ == "__main__":
    key = jax.random.PRNGKey(0)
    k1, k2, k3, k4, k5, k6 = jax.random.split(key, 6)

    n_entities = 32
    n_edges = 64
    n_relations = 4
    dim = 32
    n_users = 8

    entity_emb = jax.random.normal(k1, (n_entities, dim), dtype=jnp.float32)
    weight = jax.random.normal(k2, (n_relations, dim), dtype=jnp.float32)
    head = jax.random.randint(k3, (n_edges,), 0, n_entities, dtype=jnp.int32)
    tail = jax.random.randint(k4, (n_edges,), 0, n_entities, dtype=jnp.int32)
    edge_index = jnp.stack([head, tail], axis=0)                 # (2, E)
    edge_type = jax.random.randint(k5, (n_edges,), 1, n_relations + 1,
                                   dtype=jnp.int32)              # 1-indexed
    # "sparse" user-entity interaction matrix, densified for the kernel.
    mask = (jax.random.uniform(k6, (n_users, n_entities)) < 0.2).astype(jnp.float32)
    interact_mat = mask / jnp.maximum(mask.sum(axis=1, keepdims=True), 1.0)

    entity_agg, user_agg = hgcn_layer_forward(
        entity_emb, edge_index, edge_type, interact_mat, weight)
    jax.block_until_ready((entity_agg, user_agg))

    ref_entity_agg, ref_user_agg = hgcn_layer_reference(
        entity_emb, edge_index, edge_type, interact_mat, weight)

    assert entity_agg.shape == (n_entities, dim)
    assert user_agg.shape == (n_users, dim)
    # entity_agg: f32 path; tolerance covers the approximate EUP reciprocal.
    assert jnp.allclose(entity_agg, ref_entity_agg, atol=1e-2, rtol=1e-2), (
        float(jnp.max(jnp.abs(entity_agg - ref_entity_agg))))
    # user_agg: bf16 MXU operands (per perf review), f32 accumulation.
    assert jnp.allclose(user_agg, ref_user_agg, atol=2e-2, rtol=2e-2), (
        float(jnp.max(jnp.abs(user_agg - ref_user_agg))))

    print("KERNEL_OK")
</pallas_src>

<mosaic_0001>
module attributes {stable_mosaic.version = 11 : i64} {
  func.func @kg_agg_kernel(%arg0: i32, %arg1: memref<64xi32, #tpu.memory_space<smem>>, %arg2: memref<64xi32, #tpu.memory_space<smem>>, %arg3: memref<64xi32, #tpu.memory_space<smem>>, %arg4: memref<32x128xf32, #tpu.memory_space<vmem>>, %arg5: memref<8x128xf32, #tpu.memory_space<vmem>>, %arg6: memref<32x128xf32, #tpu.memory_space<vmem>>, %arg7: memref<32x128xf32, #tpu.memory_space<vmem>>) attributes {dimension_semantics = [#tpu.dimension_semantics<arbitrary>], iteration_bounds = array<i64: 1>, scalar_prefetch = 3 : i64, scratch_operands = 1 : i64, tpu.core_type = #tpu.core_type<tc>, window_params = [{pipeline_mode = #tpu.pipeline_mode<synchronous>, transform_indices = @transform_0, window_bounds = array<i64: 32, 128>}, {pipeline_mode = #tpu.pipeline_mode<synchronous>, transform_indices = @transform_1, window_bounds = array<i64: 8, 128>}, {pipeline_mode = #tpu.pipeline_mode<synchronous>, transform_indices = @transform_2, window_bounds = array<i64: 32, 128>}]} {
    %c0_i32 = arith.constant 0 : i32
    %0 = arith.cmpi eq, %arg0, %c0_i32 : i32
    %1 = arith.extui %0 : i1 to i32
    %c0_i32_0 = arith.constant 0 : i32
    %2 = arith.cmpi ne, %1, %c0_i32_0 : i32
    scf.if %2 {
      %cst = arith.constant 0.000000e+00 : f32
      %7 = vector.broadcast %cst : f32 to vector<32x128xf32>
      %c0 = arith.constant 0 : index
      %c0_5 = arith.constant 0 : index
      %8 = vector.load %arg6[%c0, %c0_5] : memref<32x128xf32, #tpu.memory_space<vmem>>, vector<32x128xf32>
      tpu.vector_store %arg6[%c0, %c0_5], %7 {strides = array<i32>} : memref<32x128xf32, #tpu.memory_space<vmem>>, vector<32x128xf32>,
      %cst_6 = arith.constant 0.000000e+00 : f32
      %9 = vector.broadcast %cst_6 : f32 to vector<32x128xf32>
      %c0_7 = arith.constant 0 : index
      %c0_8 = arith.constant 0 : index
      %10 = vector.load %arg7[%c0_7, %c0_8] : memref<32x128xf32, #tpu.memory_space<vmem>>, vector<32x128xf32>
      tpu.vector_store %arg7[%c0_7, %c0_8], %9 {strides = array<i32>} : memref<32x128xf32, #tpu.memory_space<vmem>>, vector<32x128xf32>,
    } else {
    }
    %c0_i32_1 = arith.constant 0 : i32
    %c64_i32 = arith.constant 64 : i32
    %3 = arith.addi %c0_i32_1, %c64_i32 : i32
    %c1_i32 = arith.constant 1 : i32
    scf.for %arg8 = %c0_i32_1 to %3 step %c1_i32  : i32 {
      %c1_i32_5 = arith.constant 1 : i32
      %7 = arith.muli %arg8, %c1_i32_5 : i32
      %c0_i32_6 = arith.constant 0 : i32
      %8 = arith.addi %c0_i32_6, %7 : i32
      %c64_i32_7 = arith.constant 64 : i32
      %9 = arith.muli %arg0, %c64_i32_7 : i32
      %10 = arith.addi %9, %8 : i32
      %c64_i32_8 = arith.constant 64 : i32
      %11 = arith.cmpi slt, %10, %c64_i32_8 : i32
      %12 = arith.extui %11 : i1 to i32
      %c0_i32_9 = arith.constant 0 : i32
      %13 = arith.cmpi ne, %12, %c0_i32_9 : i32
      scf.if %13 {
        %14 = arith.index_cast %10 : i32 to index
        %15 = memref.load %arg2[%14] : memref<64xi32, #tpu.memory_space<smem>>
        %c0_i32_10 = arith.constant 0 : i32
        %c31_i32 = arith.constant 31 : i32
        %16 = arith.maxsi %c0_i32_10, %15 : i32
        %17 = arith.minsi %c31_i32, %16 : i32
        %18 = arith.index_cast %10 : i32 to index
        %19 = memref.load %arg1[%18] : memref<64xi32, #tpu.memory_space<smem>>
        %c0_i32_11 = arith.constant 0 : i32
        %c31_i32_12 = arith.constant 31 : i32
        %20 = arith.maxsi %c0_i32_11, %19 : i32
        %21 = arith.minsi %c31_i32_12, %20 : i32
        %22 = arith.index_cast %10 : i32 to index
        %23 = memref.load %arg3[%22] : memref<64xi32, #tpu.memory_space<smem>>
        %c1_i32_13 = arith.constant 1 : i32
        %24 = arith.subi %23, %c1_i32_13 : i32
        %c0_i32_14 = arith.constant 0 : i32
        %c7_i32 = arith.constant 7 : i32
        %25 = arith.maxsi %c0_i32_14, %24 : i32
        %26 = arith.minsi %c7_i32, %25 : i32
        %27 = arith.index_cast %17 : i32 to index
        %c0 = arith.constant 0 : index
        %28 = vector.load %arg4[%27, %c0] : memref<32x128xf32, #tpu.memory_space<vmem>>, vector<1x128xf32>
        %29 = arith.index_cast %26 : i32 to index
        %c0_15 = arith.constant 0 : index
        %30 = vector.load %arg5[%29, %c0_15] : memref<8x128xf32, #tpu.memory_space<vmem>>, vector<1x128xf32>
        %31 = arith.mulf %28, %30 : vector<1x128xf32>
        %32 = arith.index_cast %21 : i32 to index
        %c0_16 = arith.constant 0 : index
        %33 = vector.load %arg6[%32, %c0_16] : memref<32x128xf32, #tpu.memory_space<vmem>>, vector<1x128xf32>
        %34 = arith.addf %33, %31 : vector<1x128xf32>
        %35 = arith.index_cast %21 : i32 to index
        %c0_17 = arith.constant 0 : index
        %36 = vector.load %arg6[%35, %c0_17] : memref<32x128xf32, #tpu.memory_space<vmem>>, vector<1x128xf32>
        tpu.vector_store %arg6[%35, %c0_17], %34 {strides = array<i32>} : memref<32x128xf32, #tpu.memory_space<vmem>>, vector<1x128xf32>,
        %37 = arith.index_cast %21 : i32 to index
        %c0_18 = arith.constant 0 : index
        %38 = vector.load %arg7[%37, %c0_18] : memref<32x128xf32, #tpu.memory_space<vmem>>, vector<1x128xf32>
        %cst = arith.constant 1.000000e+00 : f32
        %39 = vector.broadcast %cst : f32 to vector<1x128xf32>
        %40 = arith.addf %38, %39 : vector<1x128xf32>
        %41 = arith.index_cast %21 : i32 to index
        %c0_19 = arith.constant 0 : index
        %42 = vector.load %arg7[%41, %c0_19] : memref<32x128xf32, #tpu.memory_space<vmem>>, vector<1x128xf32>
        tpu.vector_store %arg7[%41, %c0_19], %40 {strides = array<i32>} : memref<32x128xf32, #tpu.memory_space<vmem>>, vector<1x128xf32>,
      } else {
      }
    }
    %c64_i32_2 = arith.constant 64 : i32
    %c0_i32_3 = arith.constant 0 : i32
    %4 = arith.cmpi eq, %arg0, %c0_i32_3 : i32
    %5 = arith.extui %4 : i1 to i32
    %c0_i32_4 = arith.constant 0 : i32
    %6 = arith.cmpi ne, %5, %c0_i32_4 : i32
    scf.if %6 {
      %c0 = arith.constant 0 : index
      %c0_5 = arith.constant 0 : index
      %7 = vector.load %arg7[%c0, %c0_5] : memref<32x128xf32, #tpu.memory_space<vmem>>, vector<32x1xf32>
      %cst = arith.constant 1.000000e+00 : f32
      %8 = vector.broadcast %cst : f32 to vector<32x1xf32>
      %9 = arith.maximumf %7, %8 : vector<32x1xf32>
      %c0_6 = arith.constant 0 : index
      %c0_7 = arith.constant 0 : index
      %10 = vector.load %arg6[%c0_6, %c0_7] : memref<32x128xf32, #tpu.memory_space<vmem>>, vector<32x128xf32>
      %11 = tpu.reciprocal %9 {approx = true} : vector<32x1xf32> -> vector<32x1xf32>
      %12 = vector.broadcast %11 : vector<32x1xf32> to vector<32x128xf32>
      %13 = arith.mulf %10, %12 : vector<32x128xf32>
      %c0_8 = arith.constant 0 : index
      %c0_9 = arith.constant 0 : index
      %14 = vector.load %arg6[%c0_8, %c0_9] : memref<32x128xf32, #tpu.memory_space<vmem>>, vector<32x128xf32>
      tpu.vector_store %arg6[%c0_8, %c0_9], %13 {strides = array<i32>} : memref<32x128xf32, #tpu.memory_space<vmem>>, vector<32x128xf32>,
    } else {
    }
    return
  }
  func.func @transform_0(%arg0: i32, %arg1: memref<64xi32, #tpu.memory_space<smem>>, %arg2: memref<64xi32, #tpu.memory_space<smem>>, %arg3: memref<64xi32, #tpu.memory_space<smem>>) -> (i32, i32) {
    %c0_i32 = arith.constant 0 : i32
    %c0_i32_0 = arith.constant 0 : i32
    %c0_i32_1 = arith.constant 0 : i32
    return %c0_i32, %c0_i32_0 : i32, i32
  }
  func.func @transform_1(%arg0: i32, %arg1: memref<64xi32, #tpu.memory_space<smem>>, %arg2: memref<64xi32, #tpu.memory_space<smem>>, %arg3: memref<64xi32, #tpu.memory_space<smem>>) -> (i32, i32) {
    %c0_i32 = arith.constant 0 : i32
    %c0_i32_0 = arith.constant 0 : i32
    %c0_i32_1 = arith.constant 0 : i32
    return %c0_i32, %c0_i32_0 : i32, i32
  }
  func.func @transform_2(%arg0: i32, %arg1: memref<64xi32, #tpu.memory_space<smem>>, %arg2: memref<64xi32, #tpu.memory_space<smem>>, %arg3: memref<64xi32, #tpu.memory_space<smem>>) -> (i32, i32) {
    %c0_i32 = arith.constant 0 : i32
    %c0_i32_0 = arith.constant 0 : i32
    %c0_i32_1 = arith.constant 0 : i32
    return %c0_i32, %c0_i32_0 : i32, i32
  }
}

module attributes {stable_mosaic.version = 11 : i64} {
  func.func @user_agg_kernel(%arg0: i32, %arg1: i32, %arg2: memref<8x128xbf16, #tpu.memory_space<vmem>>, %arg3: memref<128x128xbf16, #tpu.memory_space<vmem>>, %arg4: memref<8x128xf32, #tpu.memory_space<vmem>>, %arg5: memref<8x128xf32, #tpu.memory_space<vmem>>) attributes {dimension_semantics = [#tpu.dimension_semantics<parallel>, #tpu.dimension_semantics<arbitrary>], iteration_bounds = array<i64: 1, 1>, scalar_prefetch = 0 : i64, scratch_operands = 1 : i64, tpu.core_type = #tpu.core_type<tc>, window_params = [{transform_indices = @transform_0, window_bounds = array<i64: 8, 128>}, {transform_indices = @transform_1, window_bounds = array<i64: 128, 128>}, {transform_indices = @transform_2, window_bounds = array<i64: 8, 128>}]} {
    %c0_i32 = arith.constant 0 : i32
    %0 = arith.cmpi eq, %arg1, %c0_i32 : i32
    %1 = arith.extui %0 : i1 to i32
    %c0_i32_0 = arith.constant 0 : i32
    %2 = arith.cmpi ne, %1, %c0_i32_0 : i32
    scf.if %2 {
      %cst_10 = arith.constant 0.000000e+00 : f32
      %12 = vector.broadcast %cst_10 : f32 to vector<8x128xf32>
      %c0_11 = arith.constant 0 : index
      %c0_12 = arith.constant 0 : index
      %13 = vector.load %arg5[%c0_11, %c0_12] : memref<8x128xf32, #tpu.memory_space<vmem>>, vector<8x128xf32>
      tpu.vector_store %arg5[%c0_11, %c0_12], %12 {strides = array<i32>} : memref<8x128xf32, #tpu.memory_space<vmem>>, vector<8x128xf32>,
    } else {
    }
    %c0 = arith.constant 0 : index
    %c0_1 = arith.constant 0 : index
    %3 = vector.load %arg5[%c0, %c0_1] : memref<8x128xf32, #tpu.memory_space<vmem>>, vector<8x128xf32>
    %c0_2 = arith.constant 0 : index
    %c0_3 = arith.constant 0 : index
    %4 = vector.load %arg2[%c0_2, %c0_3] : memref<8x128xbf16, #tpu.memory_space<vmem>>, vector<8x128xbf16>
    %c0_4 = arith.constant 0 : index
    %c0_5 = arith.constant 0 : index
    %5 = vector.load %arg3[%c0_4, %c0_5] : memref<128x128xbf16, #tpu.memory_space<vmem>>, vector<128x128xbf16>
    %cst = arith.constant dense<0.000000e+00> : vector<8x128xf32>
    %6 = tpu.matmul %4, %5, %cst {dimension_numbers = #tpu.dot_dimension_numbers<[1], [0], [0], [1], [0, 0, 1, 1], [], []>} : vector<8x128xbf16>, vector<128x128xbf16>, vector<8x128xf32> -> vector<8x128xf32>
    %7 = arith.addf %3, %6 : vector<8x128xf32>
    %c0_6 = arith.constant 0 : index
    %c0_7 = arith.constant 0 : index
    %8 = vector.load %arg5[%c0_6, %c0_7] : memref<8x128xf32, #tpu.memory_space<vmem>>, vector<8x128xf32>
    tpu.vector_store %arg5[%c0_6, %c0_7], %7 {strides = array<i32>} : memref<8x128xf32, #tpu.memory_space<vmem>>, vector<8x128xf32>,
    %c0_i32_8 = arith.constant 0 : i32
    %9 = arith.cmpi eq, %arg1, %c0_i32_8 : i32
    %10 = arith.extui %9 : i1 to i32
    %c0_i32_9 = arith.constant 0 : i32
    %11 = arith.cmpi ne, %10, %c0_i32_9 : i32
    scf.if %11 {
      %c0_10 = arith.constant 0 : index
      %c0_11 = arith.constant 0 : index
      %12 = vector.load %arg5[%c0_10, %c0_11] : memref<8x128xf32, #tpu.memory_space<vmem>>, vector<8x128xf32>
      %c0_12 = arith.constant 0 : index
      %c0_13 = arith.constant 0 : index
      %13 = vector.load %arg4[%c0_12, %c0_13] : memref<8x128xf32, #tpu.memory_space<vmem>>, vector<8x128xf32>
      tpu.vector_store %arg4[%c0_12, %c0_13], %12 {strides = array<i32>} : memref<8x128xf32, #tpu.memory_space<vmem>>, vector<8x128xf32>,
    } else {
    }
    return
  }
  func.func @transform_0(%arg0: i32, %arg1: i32) -> (i32, i32) {
    %c0_i32 = arith.constant 0 : i32
    return %arg0, %arg1 : i32, i32
  }
  func.func @transform_1(%arg0: i32, %arg1: i32) -> (i32, i32) {
    %c0_i32 = arith.constant 0 : i32
    %c0_i32_0 = arith.constant 0 : i32
    return %arg1, %c0_i32 : i32, i32
  }
  func.func @transform_2(%arg0: i32, %arg1: i32) -> (i32, i32) {
    %c0_i32 = arith.constant 0 : i32
    %c0_i32_0 = arith.constant 0 : i32
    return %arg0, %c0_i32 : i32, i32
  }
}

</mosaic_0001>

<llo_original>
// kernel: hgcn_layer_forward.3
$region0: #{hgcn_layer_forward.3}
  #allocation0 [shape = 'u32[]', space=smem, size = 0x4, offset = 0x4, fixed_abs, tag = 'smem constant byte address 0x4 - core index']
  #allocation1 [shape = 'u32[144,128]{1,0:T(1,128)}', space=vmem, size = 0x12000, scoped, tag = 'internal scratch']
  #allocation2 [shape = 'f32[8,128]{1,0:T(8,128)}', space=vmem, size = 0x1000, scoped, tag = 'scratch operand']
  %s0 = inlined_call_operand.vmem [shape: bf16[8,128], index: 0, kind: input, shape index: {}]
  %s1 = inlined_call_operand.vmem [shape: bf16[128,128], index: 1, kind: input, shape index: {}]
  %s2 = inlined_call_operand.hbm [shape: f32[8,128], index: 2, kind: output, shape index: {}]
  %s3 = sld [smem:[#allocation0]]
  $region26: #{hgcn_layer_forward.3} parent=0
    _
  %s5 = ssub.s32 1, %s3
  %s6 = scalar_select 0, %s5, %s3
  $region1: #{hgcn_layer_forward.3} parent=0
    #allocation3 [shape = 'u8[4096]{0}', space=vmem, size = 0x1000, scoped, tag = 'output window, operand 0, single buffered']
    #allocation4 [shape = 's32[1]{0}', space=sflag, size = 0x4, scoped, tag = 'scoped memory for hgcn_layer_forward.3']
    %7 = vsyncpa [#allocation4], 0
    // Predicated region
    $region2: #{hgcn_layer_forward.3} parent=1 // pred_check
      _
    $region3: #{hgcn_layer_forward.3} parent=1 // pred_check_branch
      %9 = sbr.rel (0) target = $region5
    $region4: #{hgcn_layer_forward.3} parent=1 // pred_region
      _
    $region5: #{hgcn_layer_forward.3} parent=1 // pred_fallthru
      _
    // Predicated region
    $region6: #{hgcn_layer_forward.3} parent=1 // pred_check
      _
    $region7: #{hgcn_layer_forward.3} parent=1 // pred_check_branch
      %11 = sbr.rel (0) target = $region9
    $region8: #{hgcn_layer_forward.3} parent=1 // pred_region
      _
    $region9: #{hgcn_layer_forward.3} parent=1 // pred_fallthru
      _
    %p13 = scmp.eq.s32.totalorder 0, 0
    // Predicated region
    $region10: #{hgcn_layer_forward.3} parent=1 // pred_check
      %p14 = pneg %p13
    $region11: #{hgcn_layer_forward.3} parent=1 // pred_check_branch
      %16 = sbr.rel (%p14) target = $region13
    $region12: #{hgcn_layer_forward.3} parent=1 // pred_region
      %17 = vst [vmem:[#allocation2] sm:$0xff] 0.0
    $region13: #{hgcn_layer_forward.3} parent=1 // pred_fallthru
      _
    %v18 = vld [vmem:[#allocation2] sm:$0xff]
    %v19 = vld [vmem:[%s0] sm:$0xf]
    %v20 = vld [vmem:[%s1] sm:$0xf]
    %v21 = vld [vmem:[%s1 + $0x4] sm:$0xf]
    %v22 = vld [vmem:[%s1 + $0x8] sm:$0xf]
    %v23 = vld [vmem:[%s1 + $0xc] sm:$0xf]
    %v24 = vld [vmem:[%s1 + $0x10] sm:$0xf]
    %v25 = vld [vmem:[%s1 + $0x14] sm:$0xf]
    %v26 = vld [vmem:[%s1 + $0x18] sm:$0xf]
    %v27 = vld [vmem:[%s1 + $0x1c] sm:$0xf]
    %v28 = vld [vmem:[%s1 + $0x20] sm:$0xf]
    %v29 = vld [vmem:[%s1 + $0x24] sm:$0xf]
    %v30 = vld [vmem:[%s1 + $0x28] sm:$0xf]
    %v31 = vld [vmem:[%s1 + $0x2c] sm:$0xf]
    %v32 = vld [vmem:[%s1 + $0x30] sm:$0xf]
    %v33 = vld [vmem:[%s1 + $0x34] sm:$0xf]
    %v34 = vld [vmem:[%s1 + $0x38] sm:$0xf]
    %v35 = vld [vmem:[%s1 + $0x3c] sm:$0xf]
    %v52 = vunpack.c.l.b16 %v20
    %v53 = vunpack.c.l.b16 %v21
    %v54 = vunpack.c.l.b16 %v22
    %v55 = vunpack.c.l.b16 %v23
    %v56 = vunpack.c.l.b16 %v24
    %v57 = vunpack.c.l.b16 %v25
    %v58 = vunpack.c.l.b16 %v26
    %v59 = vunpack.c.l.b16 %v27
    %v60 = vunpack.c.l.b16 %v28
    %v61 = vunpack.c.l.b16 %v29
    %v62 = vunpack.c.l.b16 %v30
    %v63 = vunpack.c.l.b16 %v31
    %v64 = vunpack.c.l.b16 %v32
    %v65 = vunpack.c.l.b16 %v33
    %v66 = vunpack.c.l.b16 %v34
    %v67 = vunpack.c.l.b16 %v35
    %v68 = vpack.c.b16 %v53, %v52
    %v69 = vpack.c.b16 %v55, %v54
    %v70 = vpack.c.b16 %v57, %v56
    %v71 = vpack.c.b16 %v59, %v58
    %v72 = vpack.c.b16 %v61, %v60
    %v73 = vpack.c.b16 %v63, %v62
    %v74 = vpack.c.b16 %v65, %v64
    %v75 = vpack.c.b16 %v67, %v66
    %84 = vmatprep.subr.bf16.mxu0 0
    %85 = vmatpush1.bf16.msra.mxu0 %v75
    %86 = vmatprep.subr.bf16.mxu0 0
    %87 = vmatpush1.bf16.msra.mxu0 %v74
    %88 = vmatprep.subr.bf16.mxu0 0
    %89 = vmatpush1.bf16.msra.mxu0 %v73
    %90 = vmatprep.subr.bf16.mxu0 0
    %91 = vmatpush1.bf16.msra.mxu0 %v72
    %92 = vmatprep.subr.bf16.mxu0 0
    %93 = vmatpush1.bf16.msra.mxu0 %v71
    %94 = vmatprep.subr.bf16.mxu0 0
    %95 = vmatpush1.bf16.msra.mxu0 %v70
    %96 = vmatprep.subr.bf16.mxu0 0
    %97 = vmatpush1.bf16.msra.mxu0 %v69
    %98 = vmatprep.subr.bf16.mxu0 0
    %99 = vmatpush1.bf16.msra.mxu0 %v68
    %100 = vmatprep.subr.bf16.mxu0 0
    %101 = vmatpush2.bf16.msra.mxu0 0
    %102 = vmatprep.subr.bf16.mxu0 0
    %103 = vmatpush2.bf16.msra.mxu0 0
    %104 = vmatprep.subr.bf16.mxu0 0
    %105 = vmatpush2.bf16.msra.mxu0 0
    %106 = vmatprep.subr.bf16.mxu0 0
    %107 = vmatpush2.bf16.msra.mxu0 0
    %108 = vmatprep.subr.bf16.mxu0 0
    %109 = vmatpush2.bf16.msra.mxu0 0
    %110 = vmatprep.subr.bf16.mxu0 0
    %111 = vmatpush2.bf16.msra.mxu0 0
    %112 = vmatprep.subr.bf16.mxu0 0
    %113 = vmatpush2.bf16.msra.mxu0 0
    %114 = vmatprep.subr.bf16.mxu0 0
    %115 = vmatpush2.bf16.msra.mxu0 0
    %116 = vmatprep.mubr.bf16.mxu0 0
    %117 = vmatmul.mubr.bf16.gmra.mxu0 %v19
    %v118 = vpop.f32.mrf.mxu0
    %v119 = vadd.f32 0.0, %v118
    %v120 = vpop.f32.mrf.mxu0
    %v121 = vpop.f32.mrf.mxu0
    %v122 = vpop.f32.mrf.mxu0
    %123 = vdwg.mxu0
    %v124 = vadd.f32 %v18, %v119
    %125 = vst [vmem:[#allocation2] sm:$0xff] %v124
    // Predicated region
    $region14: #{hgcn_layer_forward.3} parent=1 // pred_check
      %p126 = pneg %p13
    $region15: #{hgcn_layer_forward.3} parent=1 // pred_check_branch
      %128 = sbr.rel (%p126) target = $region17
    $region16: #{hgcn_layer_forward.3} parent=1 // pred_region
      %v129 = vld [vmem:[#allocation2] sm:$0xff]
      %130 = vst [vmem:[#allocation3] sm:$0xff] %v129
    $region17: #{hgcn_layer_forward.3} parent=1 // pred_fallthru
      _
    // Predicated region
    $region18: #{hgcn_layer_forward.3} parent=1 // pred_check
      _
    $region19: #{hgcn_layer_forward.3} parent=1 // pred_check_branch
      %132 = sbr.rel (0) target = $region21
    $region20: #{hgcn_layer_forward.3} parent=1 // pred_region
      %s134 = ssub.s32 128, 128
      %135 = vsyncadd [#allocation4], %s134
      %s137 = sshll.u32 [#allocation3], 4
      %s138 = int_to_ptr.vmem [resolvable:$true] %s137
      %140 = dma.vmem_to_hbm [thread:$0]  %s138, 128, %s2, [#allocation4]
    $region21: #{hgcn_layer_forward.3} parent=1 // pred_fallthru
      _
    // Predicated region
    $region22: #{hgcn_layer_forward.3} parent=1 // pred_check
      _
    $region23: #{hgcn_layer_forward.3} parent=1 // pred_check_branch
      %142 = sbr.rel (0) target = $region25
    $region24: #{hgcn_layer_forward.3} parent=1 // pred_region
      %143 = dma.done [#allocation4], 128
    $region25: #{hgcn_layer_forward.3} parent=1 // pred_fallthru
      _
    %144 = vsyncpa [#allocation4], 1

// kernel: hgcn_layer_forward.2
$region0: #{hgcn_layer_forward.2}
  #allocation0 [shape = 'u32[]', space=smem, size = 0x4, offset = 0x4, fixed_abs, tag = 'smem constant byte address 0x4 - core index']
  #allocation1 [shape = 'u32[144,128]{1,0:T(1,128)}', space=vmem, size = 0x12000, scoped, tag = 'internal scratch']
  #allocation2 [shape = 'f32[32,128]{1,0:T(8,128)}', space=vmem, size = 0x4000, scoped, tag = 'scratch operand']
  #allocation3 [shape = 's32[1]{0}', space=sflag, size = 0x4, scoped, tag = 'scoped memory for hgcn_layer_forward.2']
  #allocation4 [shape = 'u8[512]{0}', space=smem, size = 0x200, scoped, tag = 'prefetched SMEM operand 0']
  #allocation5 [shape = 'u8[512]{0}', space=smem, size = 0x200, scoped, tag = 'prefetched SMEM operand 1']
  #allocation6 [shape = 'u8[512]{0}', space=smem, size = 0x200, scoped, tag = 'prefetched SMEM operand 2']
  %s0 = inlined_call_operand.vmem [shape: s32[64], index: 0, kind: input, shape index: {}]
  %s1 = inlined_call_operand.vmem [shape: s32[64], index: 1, kind: input, shape index: {}]
  %s2 = inlined_call_operand.vmem [shape: s32[64], index: 2, kind: input, shape index: {}]
  %s3 = inlined_call_operand.vmem [shape: f32[32,128], index: 3, kind: input, shape index: {}]
  %s4 = inlined_call_operand.vmem [shape: f32[8,128], index: 4, kind: input, shape index: {}]
  %s5 = inlined_call_operand.hbm [shape: f32[32,128], index: 5, kind: output, shape index: {}]
  %s6 = sld [smem:[#allocation0]]
  $region37: #{hgcn_layer_forward.2} parent=0
    _
  %s8 = ssub.s32 1, %s6
  %s9 = scalar_select 0, %s8, %s6
  %s10 = sshll.u32 %s0, 4
  %s11 = int_to_ptr.vmem [resolvable:$true] %s10
  %13 = dma.vmem_to_smem %s11, 16, [#allocation4], [#allocation3]
  %s14 = sshll.u32 %s1, 4
  %s15 = int_to_ptr.vmem [resolvable:$true] %s14
  %17 = dma.vmem_to_smem %s15, 16, [#allocation5], [#allocation3]
  %s18 = sshll.u32 %s2, 4
  %s19 = int_to_ptr.vmem [resolvable:$true] %s18
  %21 = dma.vmem_to_smem %s19, 16, [#allocation6], [#allocation3]
  %22 = dma.done [#allocation3], 48
  %23 = sfence
  $region1: #{hgcn_layer_forward.2} parent=0
    #allocation7 [shape = 'u8[16384]{0}', space=vmem, size = 0x4000, scoped, tag = 'output window, operand 0, single buffered']
    #allocation8 [shape = 's32[1]{0}', space=sflag, size = 0x4, scoped, tag = 'scoped memory for hgcn_layer_forward.2']
    %24 = vsyncpa [#allocation8], 0
    // Predicated region
    $region2: #{hgcn_layer_forward.2} parent=1 // pred_check
      _
    $region3: #{hgcn_layer_forward.2} parent=1 // pred_check_branch
      %26 = sbr.rel (0) target = $region5
    $region4: #{hgcn_layer_forward.2} parent=1 // pred_region
      _
    $region5: #{hgcn_layer_forward.2} parent=1 // pred_fallthru
      _
    // Predicated region
    $region6: #{hgcn_layer_forward.2} parent=1 // pred_check
      _
    $region7: #{hgcn_layer_forward.2} parent=1 // pred_check_branch
      %28 = sbr.rel (0) target = $region9
    $region8: #{hgcn_layer_forward.2} parent=1 // pred_region
      _
    $region9: #{hgcn_layer_forward.2} parent=1 // pred_fallthru
      _
    %p29 = scmp.eq.s32.totalorder 0, 0
    // Predicated region
    $region10: #{hgcn_layer_forward.2} parent=1 // pred_check
      %p30 = pneg %p29
    $region11: #{hgcn_layer_forward.2} parent=1 // pred_check_branch
      %32 = sbr.rel (%p30) target = $region13
    $region12: #{hgcn_layer_forward.2} parent=1 // pred_region
      %33 = vst [vmem:[#allocation7] sm:$0xff] 0.0
      %34 = vst [vmem:[#allocation7 + $0x8] sm:$0xff] 0.0
      %35 = vst [vmem:[#allocation7 + $0x10] sm:$0xff] 0.0
      %36 = vst [vmem:[#allocation7 + $0x18] sm:$0xff] 0.0
      %37 = vst [vmem:[#allocation2] sm:$0xff] 0.0
      %38 = vst [vmem:[#allocation2 + $0x8] sm:$0xff] 0.0
      %39 = vst [vmem:[#allocation2 + $0x10] sm:$0xff] 0.0
      %40 = vst [vmem:[#allocation2 + $0x18] sm:$0xff] 0.0
    $region13: #{hgcn_layer_forward.2} parent=1 // pred_fallthru
      _
    loop: start=0, step=1, limit=64
    $region14: #{hgcn_layer_forward.2} parent=1 // loop_pre_header
      _
    $region15: #{hgcn_layer_forward.2} parent=1 // loop_header
      %s42 = sphi 0, %s46
      %p43 = scmp.ge.s32.totalorder %s42, 64
    $region16: #{hgcn_layer_forward.2} parent=1 // loop_header_branch
      %45 = sbr.rel (%p43) target = $region20
    $region17: #{hgcn_layer_forward.2} parent=1 // loop_body
      %s47 = smul.u32 0, 64
      %s48 = sadd.s32 %s47, %s42
      %p49 = scmp.lt.s32.totalorder %s48, 64
      // Predicated region
      $region21: #{hgcn_layer_forward.2} parent=17 // pred_check
        %p50 = pneg %p49
      $region22: #{hgcn_layer_forward.2} parent=17 // pred_check_branch
        %52 = sbr.rel (%p50) target = $region24
      $region23: #{hgcn_layer_forward.2} parent=17 // pred_region
        %s53 = sld [smem:[#allocation5 + %s48]]
        %p54 = scmp.gt.s32.totalorder %s53, 0
        %s55 = scalar_select %p54, %s53, 0
        %p56 = scmp.lt.s32.totalorder %s55, 31
        %s57 = scalar_select %p56, %s55, 31
        %s58 = sld [smem:[#allocation4 + %s48]]
        %p59 = scmp.gt.s32.totalorder %s58, 0
        %s60 = scalar_select %p59, %s58, 0
        %p61 = scmp.lt.s32.totalorder %s60, 31
        %s62 = scalar_select %p61, %s60, 31
        %s63 = sld [smem:[#allocation6 + %s48]]
        %s64 = ssub.s32 %s63, 1
        %p65 = scmp.gt.s32.totalorder %s64, 0
        %s66 = scalar_select %p65, %s64, 0
        %p67 = scmp.lt.s32.totalorder %s66, 7
        %s68 = scalar_select %p67, %s66, 7
        %s69 = scalar_lea.vmem %s3, %s57
        %v70 = vld [vmem:[%s69] sm:$0x1]
        %s71 = scalar_lea.vmem %s4, %s68
        %v72 = vld [vmem:[%s71] sm:$0x1]
        %v73 = vmul.f32 %v70, %v72
        %s74 = scalar_lea.vmem [#allocation7], %s62
        %v75 = vld [vmem:[%s74] sm:$0x1]
        %v76 = vadd.f32 %v75, %v73
        %77 = vst [vmem:[%s74] sm:$0x1] %v76
        %s78 = scalar_lea.vmem [#allocation2], %s62
        %v79 = vld [vmem:[%s78] sm:$0x1]
        %v80 = vadd.f32 %v79, 1.0
        %81 = vst [vmem:[%s78] sm:$0x1] %v80
      $region24: #{hgcn_layer_forward.2} parent=17 // pred_fallthru
        _
    $region18: #{hgcn_layer_forward.2} parent=1 // loop_footer
      %s46 = sadd.s32 1, %s42
    $region19: #{hgcn_layer_forward.2} parent=1 // loop_footer_branch
      %41 = sbr.rel target = $region15
    $region20: #{hgcn_layer_forward.2} parent=1 // loop_exit
      _
    // Predicated region
    $region25: #{hgcn_layer_forward.2} parent=1 // pred_check
      %p82 = pneg %p29
    $region26: #{hgcn_layer_forward.2} parent=1 // pred_check_branch
      %84 = sbr.rel (%p82) target = $region28
    $region27: #{hgcn_layer_forward.2} parent=1 // pred_region
      %v85 = vld [vmem:[#allocation2] sm:$0xff]
      %v86 = vld [vmem:[#allocation2 + $0x8] sm:$0xff]
      %v87 = vld [vmem:[#allocation2 + $0x10] sm:$0xff]
      %v88 = vld [vmem:[#allocation2 + $0x18] sm:$0xff]
      %v89 = vmax.f32 %v85, 1.0
      %v90 = vmax.f32 %v86, 1.0
      %v91 = vmax.f32 %v87, 1.0
      %v92 = vmax.f32 %v88, 1.0
      %v93 = vld [vmem:[#allocation7] sm:$0xff]
      %v94 = vld [vmem:[#allocation7 + $0x8] sm:$0xff]
      %v95 = vld [vmem:[#allocation7 + $0x10] sm:$0xff]
      %v96 = vld [vmem:[#allocation7 + $0x18] sm:$0xff]
      %v97 = vrcp.pop %v89
      %v98 = vrcp.pop %v90
      %v99 = vrcp.pop %v91
      %v100 = vrcp.pop %v92
      %102 = vset.pattern.permute.xlu0 0
      %103 = vperm.xlu0 %102, %v97
      %v104 = vpop.permute.xlu0 %103
      %107 = vset.pattern.permute.xlu0 0
      %108 = vperm.xlu0 %107, %v98
      %v109 = vpop.permute.xlu0 %108
      %112 = vset.pattern.permute.xlu0 0
      %113 = vperm.xlu0 %112, %v99
      %v114 = vpop.permute.xlu0 %113
      %117 = vset.pattern.permute.xlu0 0
      %118 = vperm.xlu0 %117, %v100
      %v119 = vpop.permute.xlu0 %118
      %v121 = vmul.f32 %v93, %v104
      %v122 = vmul.f32 %v94, %v109
      %v123 = vmul.f32 %v95, %v114
      %v124 = vmul.f32 %v96, %v119
      %125 = vst [vmem:[#allocation7] sm:$0xff] %v121
      %126 = vst [vmem:[#allocation7 + $0x8] sm:$0xff] %v122
      %127 = vst [vmem:[#allocation7 + $0x10] sm:$0xff] %v123
      %128 = vst [vmem:[#allocation7 + $0x18] sm:$0xff] %v124
    $region28: #{hgcn_layer_forward.2} parent=1 // pred_fallthru
      _
    // Predicated region
    $region29: #{hgcn_layer_forward.2} parent=1 // pred_check
      _
    $region30: #{hgcn_layer_forward.2} parent=1 // pred_check_branch
      %130 = sbr.rel (0) target = $region32
    $region31: #{hgcn_layer_forward.2} parent=1 // pred_region
      %s132 = ssub.s32 512, 512
      %133 = vsyncadd [#allocation8], %s132
      %s134 = sshll.u32 [#allocation7], 4
      %s135 = int_to_ptr.vmem [resolvable:$true] %s134
      %140 = dma.vmem_to_hbm [thread:$0]  %s135, 512, %s5, [#allocation8], 128, 128, 8
    $region32: #{hgcn_layer_forward.2} parent=1 // pred_fallthru
      _
    // Predicated region
    $region33: #{hgcn_layer_forward.2} parent=1 // pred_check
      _
    $region34: #{hgcn_layer_forward.2} parent=1 // pred_check_branch
      %142 = sbr.rel (0) target = $region36
    $region35: #{hgcn_layer_forward.2} parent=1 // pred_region
      %143 = dma.done [#allocation8], 512
    $region36: #{hgcn_layer_forward.2} parent=1 // pred_fallthru
      _
    %144 = vsyncpa [#allocation8], 1

</llo_original>
